<compile_context>
chip_gen: v7x
topology: tpu7x:2x2x1
jax: 0.10.0
libtpu: 0.0.40
codegen_flags: <defaults>
</compile_context>

<pallas_src>
import functools

import jax
import jax.numpy as jnp
from jax import lax
from jax.experimental import pallas as pl
from jax.experimental.pallas import tpu as pltpu

EPS = 1e-5


def _round_up(x, m):
    return (x + m - 1) // m * m


def _vmem_limit_bytes():
    """Generation-aware scoped-VMEM limit (48 MiB on v7x, 64 MiB on v5e/v6e)."""
    phys = 128 << 20
    try:
        info = pltpu.get_tpu_info()
        phys = int(getattr(info, "vmem_capacity_bytes", phys))
    except Exception:
        pass
    return min(max(phys * 3 // 4, 32 << 20), 64 << 20)


def _pick_tile_hw(hw, c, itemsize, target_bytes):
    """Return (tile_hw, padded_hw): tile_hw multiple of 128, ~target bytes."""
    lanes_cap = max(128, (target_bytes // max(1, c * itemsize)) // 128 * 128)
    hw128 = _round_up(hw, 128)
    if hw128 <= lanes_cap:
        return hw128, hw128
    t = lanes_cap
    while t >= 128:
        padded = _round_up(hw, t)
        if padded - hw128 <= hw128 // 8:      # accept <= ~12.5% padding waste
            return t, padded
        t -= 128
    return 128, hw128                          # unreachable: 128 always divides


def _stats_kernel(x_ref, sum_ref, sq_ref):
    """Per-(n, channel) partial sum / sum-of-squares, lane-wide accumulators."""
    t = pl.program_id(1)

    @pl.when(t == 0)
    def _():
        sum_ref[...] = jnp.zeros_like(sum_ref)
        sq_ref[...] = jnp.zeros_like(sq_ref)

    c = x_ref.shape[1]
    n_strips = x_ref.shape[2] // 128           # tile_hw is a multiple of 128

    def body(i, carry):
        s, q = carry
        off = pl.multiple_of(i * 128, 128)
        strip = x_ref[0, :, pl.ds(off, 128)].astype(jnp.float32)   # (C, 128)
        return s + strip, q + strip * strip

    zero = jnp.zeros((c, 128), jnp.float32)
    unroll = True if n_strips <= 16 else 8
    s, q = lax.fori_loop(0, n_strips, body, (zero, zero), unroll=unroll)
    sum_ref[0] += s
    sq_ref[0] += q


def _normalize_kernel(x_ref, scale_ref, shift_ref, o_ref):
    x = x_ref[0].astype(jnp.float32)                     # (C, tile_hw)
    y = x * scale_ref[...] + shift_ref[...]              # folded scale/shift
    o_ref[0] = jnp.maximum(y, 0.0).astype(o_ref.dtype)


def _fused_kernel(x_ref, gamma_ref, beta_ref, o_ref, *, inv_count, eps):
    """Whole activation resident in VMEM: single HBM read of x."""
    n_items = x_ref.shape[0]
    c = x_ref.shape[1]

    def stats_body(n, carry):
        s, q = carry
        xn = x_ref[n].astype(jnp.float32)                 # (C, HW)
        s = s + jnp.sum(xn, axis=-1, keepdims=True)
        q = q + jnp.sum(xn * xn, axis=-1, keepdims=True)
        return s, q

    zero = jnp.zeros((c, 1), jnp.float32)
    s, q = lax.fori_loop(0, n_items, stats_body, (zero, zero))
    mean = s * inv_count
    var = jnp.maximum(q * inv_count - mean * mean, 0.0)   # biased variance
    scale = gamma_ref[...].astype(jnp.float32) * lax.rsqrt(var + eps)
    shift = beta_ref[...].astype(jnp.float32) - mean * scale

    def norm_body(n, carry):
        xn = x_ref[n].astype(jnp.float32)
        o_ref[n] = jnp.maximum(xn * scale + shift, 0.0).astype(o_ref.dtype)
        return carry

    lax.fori_loop(0, n_items, norm_body, 0)


def norm_act(x_nchw, gamma, beta, *, force_two_pass=False):
    """BatchNorm2d (training-mode batch stats, eps=1e-5) + ReLU.

    x_nchw: (N, C, H, W); gamma, beta: (C,). Returns (N, C, H, W).
    """
    N, C, H, W = x_nchw.shape
    HW = H * W
    inv_count = 1.0 / float(N * HW)
    out_dtype = x_nchw.dtype

    x3d = x_nchw.reshape(N, C, HW)            # contiguous view, no HBM transpose
    g2d = gamma.reshape(C, 1).astype(jnp.float32)
    b2d = beta.reshape(C, 1).astype(jnp.float32)

    vmem_limit = _vmem_limit_bytes()
    total_bytes = x_nchw.size * x_nchw.dtype.itemsize

    # ---- Fused single-pass path (x read from HBM once, normalized from VMEM).
    if not force_two_pass and total_bytes <= min(vmem_limit // 4, 16 << 20):
        vmem_spec = pl.BlockSpec(memory_space=pltpu.MemorySpace.VMEM)
        out3d = pl.pallas_call(
            functools.partial(_fused_kernel, inv_count=inv_count, eps=EPS),
            out_shape=jax.ShapeDtypeStruct((N, C, HW), out_dtype),
            in_specs=[vmem_spec, vmem_spec, vmem_spec],
            out_specs=vmem_spec,
            compiler_params=pltpu.CompilerParams(vmem_limit_bytes=vmem_limit),
        )(x3d, g2d, b2d)
        return out3d.reshape(N, C, H, W)

    # ---- Two-pass tiled path (2 reads + 1 write of x; HBM-roofline bound).
    # Pass 2 keeps 4x tile live (in + out, double-buffered) -> tile <= limit/6.
    target_tile_bytes = min(8 << 20, vmem_limit // 6)
    tile_hw, HWp = _pick_tile_hw(HW, C, x_nchw.dtype.itemsize, target_tile_bytes)
    if HWp != HW:
        # Zero padding: does not perturb sum/sumsq; inv_count uses true count.
        x3d = jnp.pad(x3d, ((0, 0), (0, 0), (0, HWp - HW)))

    grid = (N, HWp // tile_hw)
    x_spec = pl.BlockSpec((1, C, tile_hw), lambda n, t: (n, 0, t))
    part_spec = pl.BlockSpec((1, C, 128), lambda n, t: (n, 0, 0))
    cvec_spec = pl.BlockSpec((C, 1), lambda n, t: (0, 0))

    # Pass 1: per-n lane-dense partial stats (megacore-parallel over N on v7x);
    # the tiny cross-shard combine + gamma/beta fold happens in plain JAX.
    psum, psq = pl.pallas_call(
        _stats_kernel,
        out_shape=(jax.ShapeDtypeStruct((N, C, 128), jnp.float32),
                   jax.ShapeDtypeStruct((N, C, 128), jnp.float32)),
        grid=grid,
        in_specs=[x_spec],
        out_specs=(part_spec, part_spec),
        compiler_params=pltpu.CompilerParams(
            dimension_semantics=("parallel", "arbitrary"),
            vmem_limit_bytes=vmem_limit),
    )(x3d)

    total_sum = jnp.sum(psum, axis=(0, 2))                # (C,)
    total_sq = jnp.sum(psq, axis=(0, 2))
    mean = total_sum * inv_count
    var = jnp.maximum(total_sq * inv_count - mean * mean, 0.0)   # biased var
    scale = g2d[:, 0] * lax.rsqrt(var + EPS)
    shift = b2d[:, 0] - mean * scale
    scale2d = scale.reshape(C, 1)
    shift2d = shift.reshape(C, 1)

    # Pass 2: normalize + ReLU; fully parallel lane-dense tiles.
    out3d = pl.pallas_call(
        _normalize_kernel,
        out_shape=jax.ShapeDtypeStruct((N, C, HWp), out_dtype),
        grid=grid,
        in_specs=[x_spec, cvec_spec, cvec_spec],
        out_specs=x_spec,
        compiler_params=pltpu.CompilerParams(
            dimension_semantics=("parallel", "parallel"),
            vmem_limit_bytes=vmem_limit),
    )(x3d, scale2d, shift2d)

    if HWp != HW:
        out3d = out3d[:, :, :HW]
    return out3d.reshape(N, C, H, W)


def _reference(x_nchw, gamma, beta):
    mean = jnp.mean(x_nchw, axis=(0, 2, 3), keepdims=True)
    var = jnp.mean((x_nchw - mean) ** 2, axis=(0, 2, 3), keepdims=True)
    y = (x_nchw - mean) / jnp.sqrt(var + EPS)
    y = y * gamma.reshape(1, -1, 1, 1) + beta.reshape(1, -1, 1, 1)
    return jnp.maximum(y, 0.0)


if __name__ == "__main__":
    key = jax.random.PRNGKey(0)
    N, C, H, W = 2, 4, 16, 16
    x = jax.random.normal(key, (N, C, H, W), dtype=jnp.float32)

    # PyTorch BatchNorm2d default parameter init: weight = 1, bias = 0.
    gamma = jnp.ones((C,), dtype=jnp.float32)
    beta = jnp.zeros((C,), dtype=jnp.float32)

    out = jax.block_until_ready(norm_act(x, gamma, beta))
    ref = _reference(x, gamma, beta)
    assert out.shape == (N, C, H, W)
    assert jnp.allclose(out, ref, atol=1e-4, rtol=1e-4), "fused path mismatch"

    # Also exercise the tiled two-pass path (incl. HW padding + JAX combine).
    x2 = jax.random.normal(jax.random.PRNGKey(1), (2, 8, 24, 24),
                           dtype=jnp.float32) * 2.0 + 0.5
    g2 = jax.random.normal(jax.random.PRNGKey(2), (8,), dtype=jnp.float32)
    b2 = jax.random.normal(jax.random.PRNGKey(3), (8,), dtype=jnp.float32)
    out2 = jax.block_until_ready(norm_act(x2, g2, b2, force_two_pass=True))
    ref2 = _reference(x2, g2, b2)
    assert jnp.allclose(out2, ref2, atol=1e-4, rtol=1e-4), "two-pass mismatch"

    print("KERNEL_OK")
</pallas_src>

<mosaic_0001>
module attributes {stable_mosaic.version = 11 : i64} {
  func.func @_fused_kernel(%arg0: memref<2x4x256xf32, #tpu.memory_space<vmem>>, %arg1: memref<4x1xf32, #tpu.memory_space<vmem>>, %arg2: memref<4x1xf32, #tpu.memory_space<vmem>>, %arg3: memref<2x4x256xf32, #tpu.memory_space<vmem>>) attributes {dimension_semantics = [], scalar_prefetch = 0 : i64, scratch_operands = 0 : i64, tpu.core_type = #tpu.core_type<tc>} {
    %cst = arith.constant 0.000000e+00 : f32
    %0 = vector.broadcast %cst : f32 to vector<4x1xf32>
    %c0_i32 = arith.constant 0 : i32
    %c2_i32 = arith.constant 2 : i32
    %1 = arith.addi %c0_i32, %c2_i32 : i32
    %c1_i32 = arith.constant 1 : i32
    %2:2 = scf.for %arg4 = %c0_i32 to %1 step %c1_i32 iter_args(%arg5 = %0, %arg6 = %0) -> (vector<4x1xf32>, vector<4x1xf32>)  : i32 {
      %20 = arith.index_cast %arg4 : i32 to index
      %c0_12 = arith.constant 0 : index
      %c0_13 = arith.constant 0 : index
      %21 = vector.load %arg0[%20, %c0_12, %c0_13] : memref<2x4x256xf32, #tpu.memory_space<vmem>>, vector<1x4x256xf32>
      %22 = vector.shape_cast %21 : vector<1x4x256xf32> to vector<4x256xf32>
      %cst_14 = arith.constant dense<0.000000e+00> : vector<4xf32>
      %23 = vector.multi_reduction <add>, %22, %cst_14 [1] : vector<4x256xf32> to vector<4xf32>
      %24 = vector.shape_cast %23 : vector<4xf32> to vector<4x1xf32>
      %25 = arith.addf %arg5, %24 : vector<4x1xf32>
      %26 = arith.mulf %22, %22 : vector<4x256xf32>
      %cst_15 = arith.constant dense<0.000000e+00> : vector<4xf32>
      %27 = vector.multi_reduction <add>, %26, %cst_15 [1] : vector<4x256xf32> to vector<4xf32>
      %28 = vector.shape_cast %27 : vector<4xf32> to vector<4x1xf32>
      %29 = arith.addf %arg6, %28 : vector<4x1xf32>
      scf.yield %25, %29 : vector<4x1xf32>, vector<4x1xf32>
    }
    %c2_i32_0 = arith.constant 2 : i32
    %cst_1 = arith.constant 0.001953125 : f32
    %3 = vector.broadcast %cst_1 : f32 to vector<4x1xf32>
    %4 = arith.mulf %2#0, %3 : vector<4x1xf32>
    %cst_2 = arith.constant 0.001953125 : f32
    %5 = vector.broadcast %cst_2 : f32 to vector<4x1xf32>
    %6 = arith.mulf %2#1, %5 : vector<4x1xf32>
    %7 = arith.mulf %4, %4 : vector<4x1xf32>
    %8 = arith.subf %6, %7 : vector<4x1xf32>
    %cst_3 = arith.constant 0.000000e+00 : f32
    %9 = vector.broadcast %cst_3 : f32 to vector<4x1xf32>
    %10 = arith.maximumf %8, %9 : vector<4x1xf32>
    %c0 = arith.constant 0 : index
    %c0_4 = arith.constant 0 : index
    %11 = vector.load %arg1[%c0, %c0_4] : memref<4x1xf32, #tpu.memory_space<vmem>>, vector<4x1xf32>
    %cst_5 = arith.constant 9.99999974E-6 : f32
    %12 = vector.broadcast %cst_5 : f32 to vector<4x1xf32>
    %13 = arith.addf %10, %12 : vector<4x1xf32>
    %14 = math.rsqrt %13 : vector<4x1xf32>
    %15 = arith.mulf %11, %14 : vector<4x1xf32>
    %c0_6 = arith.constant 0 : index
    %c0_7 = arith.constant 0 : index
    %16 = vector.load %arg2[%c0_6, %c0_7] : memref<4x1xf32, #tpu.memory_space<vmem>>, vector<4x1xf32>
    %17 = arith.mulf %4, %15 : vector<4x1xf32>
    %18 = arith.subf %16, %17 : vector<4x1xf32>
    %c0_i32_8 = arith.constant 0 : i32
    %c2_i32_9 = arith.constant 2 : i32
    %19 = arith.addi %c0_i32_8, %c2_i32_9 : i32
    %c1_i32_10 = arith.constant 1 : i32
    scf.for %arg4 = %c0_i32_8 to %19 step %c1_i32_10  : i32 {
      %20 = arith.index_cast %arg4 : i32 to index
      %c0_12 = arith.constant 0 : index
      %c0_13 = arith.constant 0 : index
      %21 = vector.load %arg0[%20, %c0_12, %c0_13] : memref<2x4x256xf32, #tpu.memory_space<vmem>>, vector<1x4x256xf32>
      %22 = vector.shape_cast %21 : vector<1x4x256xf32> to vector<4x256xf32>
      %23 = vector.broadcast %15 : vector<4x1xf32> to vector<4x256xf32>
      %24 = arith.mulf %22, %23 : vector<4x256xf32>
      %25 = vector.broadcast %18 : vector<4x1xf32> to vector<4x256xf32>
      %26 = arith.addf %24, %25 : vector<4x256xf32>
      %cst_14 = arith.constant 0.000000e+00 : f32
      %27 = vector.broadcast %cst_14 : f32 to vector<4x256xf32>
      %28 = arith.maximumf %26, %27 : vector<4x256xf32>
      %29 = arith.index_cast %arg4 : i32 to index
      %c0_15 = arith.constant 0 : index
      %c0_16 = arith.constant 0 : index
      %30 = vector.load %arg3[%29, %c0_15, %c0_16] : memref<2x4x256xf32, #tpu.memory_space<vmem>>, vector<1x4x256xf32>
      %31 = vector.shape_cast %30 : vector<1x4x256xf32> to vector<4x256xf32>
      %32 = vector.shape_cast %28 : vector<4x256xf32> to vector<1x4x256xf32>
      tpu.vector_store %arg3[%29, %c0_15, %c0_16], %32 {strides = array<i32>} : memref<2x4x256xf32, #tpu.memory_space<vmem>>, vector<1x4x256xf32>,
    }
    %c2_i32_11 = arith.constant 2 : i32
    return
  }
}

</mosaic_0001>

<llo_original>
// kernel: tpu_custom_call.1
$region0: #{tpu_custom_call.1}
  #allocation0 [shape = 'u32[]', space=smem, size = 0x4, offset = 0x4, fixed_abs, tag = 'smem constant byte address 0x4 - core index']
  #allocation1 [shape = 'u32[144,128]{1,0:T(1,128)}', space=vmem, size = 0x12000, scoped, tag = 'internal scratch']
  %s0 = inlined_call_operand.hbm [shape: f32[2,4,256], index: 0, kind: input, shape index: {}]
  %s1 = inlined_call_operand.hbm [shape: f32[4,1], index: 1, kind: input, shape index: {}]
  %s2 = inlined_call_operand.hbm [shape: f32[4,1], index: 2, kind: input, shape index: {}]
  %s3 = inlined_call_operand.hbm [shape: f32[2,4,256], index: 3, kind: output, shape index: {}]
  %s4 = sld [smem:[#allocation0]]
  $region48: #{tpu_custom_call.1} parent=0
    _
  %s6 = ssub.s32 1, %s4
  %s7 = scalar_select 0, %s6, %s4
  $region1: #{tpu_custom_call.1} parent=0
    #allocation2 [shape = 'u8[8192]{0}', space=vmem, size = 0x2000, scoped, tag = 'input window, operand 0, single buffered']
    #allocation3 [shape = 's32[1]{0}', space=sflag, size = 0x4, scoped, tag = 'scoped memory for tpu_custom_call.1']
    #allocation4 [shape = 's32[1]{0}', space=sflag, size = 0x4, scoped, tag = 'scoped memory for tpu_custom_call.1']
    #allocation5 [shape = 'u8[2048]{0}', space=vmem, size = 0x800, scoped, tag = 'input window, operand 1, single buffered']
    #allocation6 [shape = 's32[1]{0}', space=sflag, size = 0x4, scoped, tag = 'scoped memory for tpu_custom_call.1']
    #allocation7 [shape = 'u8[2048]{0}', space=vmem, size = 0x800, scoped, tag = 'input window, operand 2, single buffered']
    #allocation8 [shape = 'u8[8192]{0}', space=vmem, size = 0x2000, scoped, tag = 'output window, operand 0, single buffered']
    %8 = vsyncpa [#allocation3], 0
    %9 = vsyncpa [#allocation6], 0
    %10 = vsyncpa [#allocation4], 0
    // Predicated region
    $region2: #{tpu_custom_call.1} parent=1 // pred_check
      _
    $region3: #{tpu_custom_call.1} parent=1 // pred_check_branch
      %12 = sbr.rel (0) target = $region5
    $region4: #{tpu_custom_call.1} parent=1 // pred_region
      %s14 = ssub.s32 256, 256
      %15 = vsyncadd [#allocation3], %s14
      %s16 = sshll.u32 [#allocation2], 4
      %s17 = int_to_ptr.vmem [resolvable:$true] %s16
      %22 = dma.hbm_to_vmem [thread:$0]  %s0, 256, %s17, [#allocation3], 128, 128, 8
    $region5: #{tpu_custom_call.1} parent=1 // pred_fallthru
      _
    // Predicated region
    $region6: #{tpu_custom_call.1} parent=1 // pred_check
      _
    $region7: #{tpu_custom_call.1} parent=1 // pred_check_branch
      %24 = sbr.rel (0) target = $region9
    $region8: #{tpu_custom_call.1} parent=1 // pred_region
      %s26 = ssub.s32 64, 64
      %27 = vsyncadd [#allocation6], %s26
      %s29 = sshll.u32 [#allocation5], 4
      %s30 = int_to_ptr.vmem [resolvable:$true] %s29
      %32 = dma.hbm_to_vmem [thread:$0]  %s1, 64, %s30, [#allocation6]
    $region9: #{tpu_custom_call.1} parent=1 // pred_fallthru
      _
    // Predicated region
    $region10: #{tpu_custom_call.1} parent=1 // pred_check
      _
    $region11: #{tpu_custom_call.1} parent=1 // pred_check_branch
      %34 = sbr.rel (0) target = $region13
    $region12: #{tpu_custom_call.1} parent=1 // pred_region
      %s36 = ssub.s32 64, 64
      %37 = vsyncadd [#allocation6], %s36
      %s39 = sshll.u32 [#allocation7], 4
      %s40 = int_to_ptr.vmem [resolvable:$true] %s39
      %42 = dma.hbm_to_vmem [thread:$0]  %s2, 64, %s40, [#allocation6]
    $region13: #{tpu_custom_call.1} parent=1 // pred_fallthru
      _
    // Predicated region
    $region14: #{tpu_custom_call.1} parent=1 // pred_check
      _
    $region15: #{tpu_custom_call.1} parent=1 // pred_check_branch
      %44 = sbr.rel (0) target = $region17
    $region16: #{tpu_custom_call.1} parent=1 // pred_region
      %45 = dma.done [#allocation3], 256
    $region17: #{tpu_custom_call.1} parent=1 // pred_fallthru
      _
    // Predicated region
    $region18: #{tpu_custom_call.1} parent=1 // pred_check
      _
    $region19: #{tpu_custom_call.1} parent=1 // pred_check_branch
      %47 = sbr.rel (0) target = $region21
    $region20: #{tpu_custom_call.1} parent=1 // pred_region
      %48 = dma.done [#allocation6], 64
    $region21: #{tpu_custom_call.1} parent=1 // pred_fallthru
      _
    // Predicated region
    $region22: #{tpu_custom_call.1} parent=1 // pred_check
      _
    $region23: #{tpu_custom_call.1} parent=1 // pred_check_branch
      %50 = sbr.rel (0) target = $region25
    $region24: #{tpu_custom_call.1} parent=1 // pred_region
      %51 = dma.done [#allocation6], 64
    $region25: #{tpu_custom_call.1} parent=1 // pred_fallthru
      _
    loop: start=0, step=1, limit=2
    $region26: #{tpu_custom_call.1} parent=1 // loop_pre_header
      _
    $region27: #{tpu_custom_call.1} parent=1 // loop_header
      %s53 = sphi 0, %s57
      %p54 = scmp.ge.s32.totalorder %s53, 2
      %v58 = vphi 0.0, %v73
      %v59 = vphi 0.0, %v83
    $region28: #{tpu_custom_call.1} parent=1 // loop_header_branch
      %56 = sbr.rel (%p54) target = $region32
    $region29: #{tpu_custom_call.1} parent=1 // loop_body
      %s60 = smul.u32 %s53, 2
      %s61 = smul.addr %s60, 4
      %s62 = scalar_lea.vmem [#allocation2], %s61
      %v63 = vld [vmem:[%s62] sm:$0xff]
      %v65 = vcombine.high %v63, %v63
      %vm67 = vcmask 1043456
      %v68 = vsel %vm67, %v63, 0.0
      %v69 = vsel %vm67, %v65, 0.0
      %v70 = vadd.f32 %v68, %v69
      %71 = vadd.xlane.f32.xlu0 %v70
      %v72 = vpop.xlane.xlu0 %71
      %v73 = vadd.f32 %v58, %v72
      %v74 = vmul.f32 %v63, %v63
      %v76 = vcombine.high %v74, %v74
      %v78 = vsel %vm67, %v74, 0.0
      %v79 = vsel %vm67, %v76, 0.0
      %v80 = vadd.f32 %v78, %v79
      %81 = vadd.xlane.f32.xlu0 %v80
      %v82 = vpop.xlane.xlu0 %81
      %v83 = vadd.f32 %v59, %v82
    $region30: #{tpu_custom_call.1} parent=1 // loop_footer
      %s57 = sadd.s32 1, %s53
    $region31: #{tpu_custom_call.1} parent=1 // loop_footer_branch
      %52 = sbr.rel target = $region27
    $region32: #{tpu_custom_call.1} parent=1 // loop_exit
      _
    %v84 = vmul.f32 %v58, 0.001953125
    %v85 = vmul.f32 %v59, 0.001953125
    %v86 = vmul.f32 %v84, %v84
    %v87 = vsub.f32 %v85, %v86
    %v88 = vmax.f32 %v87, 0.0
    %v89 = vld [vmem:[#allocation5] sm:$0xf]
    %v90 = vadd.f32 %v88, 1e-05
    %v91 = vrsqrt.pop %v90
    %v92 = vmul.f32 %v89, %v91
    %v93 = vld [vmem:[#allocation7] sm:$0xf]
    %v94 = vmul.f32 %v84, %v92
    %v95 = vsub.f32 %v93, %v94
    loop: start=0, step=1, limit=2
    $region33: #{tpu_custom_call.1} parent=1 // loop_pre_header
      _
    $region34: #{tpu_custom_call.1} parent=1 // loop_header
      %s97 = sphi 0, %s101
      %p98 = scmp.ge.s32.totalorder %s97, 2
    $region35: #{tpu_custom_call.1} parent=1 // loop_header_branch
      %100 = sbr.rel (%p98) target = $region39
    $region36: #{tpu_custom_call.1} parent=1 // loop_body
      %s102 = smul.u32 %s97, 2
      %s103 = smul.addr %s102, 4
      %s104 = scalar_lea.vmem [#allocation2], %s103
      %v105 = vld [vmem:[%s104] sm:$0xff]
      %107 = vset.pattern.permute.xlu0 0
      %108 = vperm.xlu0 %107, %v92
      %v109 = vpop.permute.xlu0 %108
      %v111 = vunpack.c.l.s4 839922192
      %v112 = vunpack.c.0.s8 %v111
      %v113 = vlaneseq
      %v114 = vshrl.u32 %v113, 7
      %v115 = vsub.s32 %v112, %v114
      %v116 = vrot.slane %v109, %v115
      %v118 = vmul.f32 %v105, %v116
      %120 = vset.pattern.permute.xlu0 0
      %121 = vperm.xlu0 %120, %v95
      %v122 = vpop.permute.xlu0 %121
      %v124 = vunpack.c.l.s4 839922192
      %v125 = vunpack.c.0.s8 %v124
      %v126 = vlaneseq
      %v127 = vshrl.u32 %v126, 7
      %v128 = vsub.s32 %v125, %v127
      %v129 = vrot.slane %v122, %v128
      %v131 = vadd.f32 %v118, %v129
      %v132 = vmax.f32 %v131, 0.0
      %s133 = smul.addr %s102, 4
      %s134 = scalar_lea.vmem [#allocation8], %s133
      %135 = vst [vmem:[%s134] sm:$0xff] %v132
    $region37: #{tpu_custom_call.1} parent=1 // loop_footer
      %s101 = sadd.s32 1, %s97
    $region38: #{tpu_custom_call.1} parent=1 // loop_footer_branch
      %96 = sbr.rel target = $region34
    $region39: #{tpu_custom_call.1} parent=1 // loop_exit
      _
    // Predicated region
    $region40: #{tpu_custom_call.1} parent=1 // pred_check
      _
    $region41: #{tpu_custom_call.1} parent=1 // pred_check_branch
      %137 = sbr.rel (0) target = $region43
    $region42: #{tpu_custom_call.1} parent=1 // pred_region
      %s139 = ssub.s32 256, 256
      %140 = vsyncadd [#allocation4], %s139
      %s141 = sshll.u32 [#allocation8], 4
      %s142 = int_to_ptr.vmem [resolvable:$true] %s141
      %147 = dma.vmem_to_hbm [thread:$0]  %s142, 256, %s3, [#allocation4], 128, 128, 8
    $region43: #{tpu_custom_call.1} parent=1 // pred_fallthru
      _
    // Predicated region
    $region44: #{tpu_custom_call.1} parent=1 // pred_check
      _
    $region45: #{tpu_custom_call.1} parent=1 // pred_check_branch
      %149 = sbr.rel (0) target = $region47
    $region46: #{tpu_custom_call.1} parent=1 // pred_region
      %150 = dma.done [#allocation4], 256
    $region47: #{tpu_custom_call.1} parent=1 // pred_fallthru
      _
    %151 = vsyncpa [#allocation3], 1
    %152 = vsyncpa [#allocation6], 1
    %153 = vsyncpa [#allocation4], 1

</llo_original>
